<compile_context>
chip_gen: v7x
topology: tpu7x:2x2x1
jax: 0.10.0
libtpu: 0.0.40
codegen_flags: <defaults>
</compile_context>

<pallas_src>
import math

import jax
import jax.numpy as jnp
from jax.experimental import pallas as pl
from jax.experimental.pallas import tpu as pltpu

LATENT_DIM = 512
N_LAYERS = 4
LR_MUL = 0.01
NEG_SLOPE = 0.2
LRELU_SCALE = math.sqrt(2.0)                        # fused_leaky_relu output scale
W_SCALE = (1.0 / math.sqrt(LATENT_DIM)) * LR_MUL    # EqualLinear runtime weight scale
PIXELNORM_EPS = 1e-8


def _round8(n):
    return ((n + 7) // 8) * 8


def _pixelnorm(x):
    # PixelNorm: x * rsqrt(mean(x^2, feature) + eps)
    return x * jax.lax.rsqrt(jnp.mean(x * x, axis=-1, keepdims=True) + PIXELNORM_EPS)


def _lrelu(y):
    # sqrt(2) output scale is folded into the stored weights/biases, so the
    # epilogue is just mul + max (cheaper than compare+select; NEG_SLOPE < 1).
    return jnp.maximum(y, NEG_SLOPE * y)


# ---------------------------------------------------------------------------
# Path B: multi batch tile.  All four pre-scaled bf16 weight matrices stay
# resident in VMEM (constant index_map -> DMA'd once, reused by every tile);
# the batch axis is 'parallel' (megacore / v7x two-TC sharding).
# ---------------------------------------------------------------------------
def _mapper_kernel_resident(x_ref, w_ref, b_ref, o_ref):
    """x_ref: (TB, D) f32; w_ref: (N_LAYERS, D, D) bf16 [in,out] (scales folded);
    b_ref: (N_LAYERS, 1, D) f32 (scales folded); o_ref: (TB, D) f32."""
    x = x_ref[...].astype(jnp.float32)
    x = _pixelnorm(x)
    for i in range(N_LAYERS):
        y = jnp.dot(x.astype(jnp.bfloat16), w_ref[i],
                    preferred_element_type=jnp.float32)
        x = _lrelu(y + b_ref[i])
    o_ref[...] = x.astype(o_ref.dtype)


# ---------------------------------------------------------------------------
# Path A (latency path, single batch tile): grid over the 4 layers so layer l+1's
# weight fetch overlaps layer l's matmul.  Activation carried across layer steps
# in a bf16 VMEM scratch; PixelNorm at l==0, store at the last layer.
# ---------------------------------------------------------------------------
def _mapper_kernel_layerwise(x_ref, w_ref, b_ref, o_ref, act_ref):
    """x_ref: (TB, D) f32 (resident); w_ref: (1, D, D) bf16; b_ref: (1, 1, D) f32;
    o_ref: (TB, D) f32; act_ref: VMEM (TB, D) bf16 scratch (activation carry)."""
    l = pl.program_id(0)

    @pl.when(l == 0)
    def _():
        x = _pixelnorm(x_ref[...].astype(jnp.float32))
        act_ref[...] = x.astype(act_ref.dtype)

    y = jnp.dot(act_ref[...], w_ref[0], preferred_element_type=jnp.float32)
    y = _lrelu(y + b_ref[0])

    @pl.when(l < pl.num_programs(0) - 1)
    def _():
        act_ref[...] = y.astype(act_ref.dtype)

    @pl.when(l == pl.num_programs(0) - 1)
    def _():
        o_ref[...] = y.astype(o_ref.dtype)


def mapper_forward(x, weights, biases, *, tile_b=512):
    """x: (B, D) f32.
    weights: (N_LAYERS, D, D) bf16, layout [in, out], W_SCALE*sqrt(2) folded in.
    biases:  (N_LAYERS, 1, D) f32, LR_MUL*sqrt(2) folded in."""
    B, D = x.shape
    assert weights.shape == (N_LAYERS, D, D)
    assert biases.shape == (N_LAYERS, 1, D)

    # Choose batch tile: as large as possible (amortizes MXU weight pushes),
    # sublane-rounded for small batches; when the batch exceeds one tile, split
    # into >= 2 balanced tiles so v7x's two TensorCores both get work.
    Bp8 = max(8, _round8(B))
    if Bp8 <= tile_b:
        tb = Bp8                                       # single tile -> latency path
    else:
        n_tiles = max(2, pl.cdiv(Bp8, tile_b))
        tb = _round8(pl.cdiv(Bp8, n_tiles))
    Bp = pl.cdiv(B, tb) * tb
    if Bp != B:
        # Zero rows are safe through PixelNorm (0 * rsqrt(eps) = 0); sliced off below.
        x = jnp.pad(x, ((0, Bp - B), (0, 0)))
    n_tiles = Bp // tb

    cost = pl.CostEstimate(
        flops=2 * Bp * D * D * N_LAYERS,
        transcendentals=Bp,  # one rsqrt per row
        bytes_accessed=weights.size * weights.dtype.itemsize
        + biases.size * biases.dtype.itemsize
        + 2 * Bp * D * 4,
    )

    if n_tiles == 1:
        # Latency path: pipeline per-layer 512 KiB weight fetches.
        out = pl.pallas_call(
            _mapper_kernel_layerwise,
            out_shape=jax.ShapeDtypeStruct((Bp, D), jnp.float32),
            grid_spec=pltpu.PrefetchScalarGridSpec(
                num_scalar_prefetch=0,
                grid=(N_LAYERS,),
                in_specs=[
                    pl.BlockSpec((tb, D), lambda l: (0, 0)),        # resident input
                    pl.BlockSpec((1, D, D), lambda l: (l, 0, 0)),   # per-layer weight
                    pl.BlockSpec((1, 1, D), lambda l: (l, 0, 0)),   # per-layer bias
                ],
                out_specs=pl.BlockSpec((tb, D), lambda l: (0, 0)),
                scratch_shapes=[pltpu.VMEM((tb, D), jnp.bfloat16)],
            ),
            compiler_params=pltpu.CompilerParams(
                dimension_semantics=("arbitrary",),
            ),
            cost_estimate=cost,
        )(x, weights, biases)
    else:
        # Throughput path: weights resident, batch tiles in parallel.
        # (Constant index_map -> weights/biases DMA'd once.  pl.Buffered(1) could
        #  drop their unused second buffer, but VMEM is already far under budget
        #  at these tile sizes: ~8 MiB at tb=512.)
        out = pl.pallas_call(
            _mapper_kernel_resident,
            out_shape=jax.ShapeDtypeStruct((Bp, D), jnp.float32),
            grid_spec=pltpu.PrefetchScalarGridSpec(
                num_scalar_prefetch=0,
                grid=(n_tiles,),
                in_specs=[
                    pl.BlockSpec((tb, D), lambda i: (i, 0)),
                    pl.BlockSpec((N_LAYERS, D, D), lambda i: (0, 0, 0)),
                    pl.BlockSpec((N_LAYERS, 1, D), lambda i: (0, 0, 0)),
                ],
                out_specs=pl.BlockSpec((tb, D), lambda i: (i, 0)),
            ),
            compiler_params=pltpu.CompilerParams(
                dimension_semantics=("parallel",),
            ),
            cost_estimate=cost,
        )(x, weights, biases)
    return out[:B]


def reference_forward(x, weights, biases):
    """Pure-JAX reference mirroring the kernel math (bf16 matmul, f32 epilogue,
    sqrt(2) folded into the stored params)."""
    x = _pixelnorm(x)
    for i in range(N_LAYERS):
        y = jnp.dot(x.astype(jnp.bfloat16), weights[i],
                    preferred_element_type=jnp.float32) + biases[i]
        x = jnp.maximum(y, NEG_SLOPE * y)
    return x


def init_params(key):
    # PyTorch init: weight = randn(out_dim, in_dim) / lr_mul ; bias = zeros(out_dim)
    # One-time host folds:
    #   W_stored = W.T * W_SCALE * sqrt(2)   (bf16, [in, out])
    #   b_stored = b * LR_MUL * sqrt(2)      (f32)
    # (sqrt(2) fold is exact: sqrt(2)*lrelu(z) == lrelu(sqrt(2)*z).)
    wkey = jax.random.split(key, N_LAYERS)
    ws = []
    for i in range(N_LAYERS):
        w_oi = jax.random.normal(wkey[i], (LATENT_DIM, LATENT_DIM), jnp.float32) / LR_MUL
        ws.append((w_oi.T * (W_SCALE * LRELU_SCALE)).astype(jnp.bfloat16))
    weights = jnp.stack(ws, axis=0)                              # (N_LAYERS, D, D) bf16
    # PyTorch bias init is zeros; pretrained biases must be folded with
    # LR_MUL * sqrt(2) in the loading path.
    biases = jnp.zeros((N_LAYERS, 1, LATENT_DIM), jnp.float32)
    return weights, biases


if __name__ == "__main__":
    key = jax.random.PRNGKey(0)
    k_x, k_w, k_x2 = jax.random.split(key, 3)

    weights, biases = init_params(k_w)

    # Small batch -> single-tile latency path (layer-pipelined weight fetches).
    x_small = jax.random.normal(k_x, (8, LATENT_DIM), jnp.float32)
    out_small = jax.block_until_ready(mapper_forward(x_small, weights, biases))
    ref_small = reference_forward(x_small, weights, biases)
    assert out_small.shape == (8, LATENT_DIM)
    assert jnp.allclose(out_small, ref_small, atol=2e-2, rtol=2e-2), "mismatch (latency path)"

    # Slightly larger batch with a tiny tile cap -> exercises the multi-tile
    # resident-weights path (grid of 2, padded batch, 'parallel' axis).
    x_big = jax.random.normal(k_x2, (13, LATENT_DIM), jnp.float32)
    out_big = jax.block_until_ready(mapper_forward(x_big, weights, biases, tile_b=8))
    ref_big = reference_forward(x_big, weights, biases)
    assert out_big.shape == (13, LATENT_DIM)
    assert jnp.allclose(out_big, ref_big, atol=2e-2, rtol=2e-2), "mismatch (resident path)"

    print("KERNEL_OK")
</pallas_src>

<mosaic_0001>
module attributes {stable_mosaic.version = 11 : i64} {
  func.func @_mapper_kernel_layerwise(%arg0: i32, %arg1: memref<8x512xf32, #tpu.memory_space<vmem>>, %arg2: memref<1x512x512xbf16, #tpu.memory_space<vmem>>, %arg3: memref<1x1x512xf32, #tpu.memory_space<vmem>>, %arg4: memref<8x512xf32, #tpu.memory_space<vmem>>, %arg5: memref<8x512xbf16, #tpu.memory_space<vmem>>) attributes {dimension_semantics = [#tpu.dimension_semantics<arbitrary>], iteration_bounds = array<i64: 4>, scalar_prefetch = 0 : i64, scratch_operands = 1 : i64, tpu.core_type = #tpu.core_type<tc>, window_params = [{pipeline_mode = #tpu.pipeline_mode<synchronous>, transform_indices = @transform_0, window_bounds = array<i64: 8, 512>}, {transform_indices = @transform_1, window_bounds = array<i64: 1, 512, 512>}, {transform_indices = @transform_2, window_bounds = array<i64: 1, 1, 512>}, {pipeline_mode = #tpu.pipeline_mode<synchronous>, transform_indices = @transform_3, window_bounds = array<i64: 8, 512>}]} {
    %c0_i32 = arith.constant 0 : i32
    %0 = arith.cmpi eq, %arg0, %c0_i32 : i32
    %1 = arith.extui %0 : i1 to i32
    %c0_i32_0 = arith.constant 0 : i32
    %2 = arith.cmpi ne, %1, %c0_i32_0 : i32
    scf.if %2 {
      %c0_12 = arith.constant 0 : index
      %c0_13 = arith.constant 0 : index
      %20 = vector.load %arg1[%c0_12, %c0_13] : memref<8x512xf32, #tpu.memory_space<vmem>>, vector<8x512xf32>
      %21 = arith.mulf %20, %20 : vector<8x512xf32>
      %cst_14 = arith.constant dense<0.000000e+00> : vector<8xf32>
      %22 = vector.multi_reduction <add>, %21, %cst_14 [1] : vector<8x512xf32> to vector<8xf32>
      %23 = vector.shape_cast %22 : vector<8xf32> to vector<8x1xf32>
      %cst_15 = arith.constant 5.120000e+02 : f32
      %24 = vector.broadcast %cst_15 : f32 to vector<8x1xf32>
      %25 = arith.divf %23, %24 : vector<8x1xf32>
      %cst_16 = arith.constant 9.99999993E-9 : f32
      %26 = vector.broadcast %cst_16 : f32 to vector<8x1xf32>
      %27 = arith.addf %25, %26 : vector<8x1xf32>
      %28 = math.rsqrt %27 : vector<8x1xf32>
      %29 = vector.broadcast %28 : vector<8x1xf32> to vector<8x512xf32>
      %30 = arith.mulf %20, %29 : vector<8x512xf32>
      %31 = arith.truncf %30 : vector<8x512xf32> to vector<8x512xbf16>
      %c0_17 = arith.constant 0 : index
      %c0_18 = arith.constant 0 : index
      %32 = vector.load %arg5[%c0_17, %c0_18] : memref<8x512xbf16, #tpu.memory_space<vmem>>, vector<8x512xbf16>
      tpu.vector_store %arg5[%c0_17, %c0_18], %31 {strides = array<i32>} : memref<8x512xbf16, #tpu.memory_space<vmem>>, vector<8x512xbf16>,
    } else {
    }
    %c0 = arith.constant 0 : index
    %c0_1 = arith.constant 0 : index
    %3 = vector.load %arg5[%c0, %c0_1] : memref<8x512xbf16, #tpu.memory_space<vmem>>, vector<8x512xbf16>
    %c0_2 = arith.constant 0 : index
    %c0_3 = arith.constant 0 : index
    %c0_4 = arith.constant 0 : index
    %4 = vector.load %arg2[%c0_2, %c0_3, %c0_4] : memref<1x512x512xbf16, #tpu.memory_space<vmem>>, vector<1x512x512xbf16>
    %5 = vector.shape_cast %4 : vector<1x512x512xbf16> to vector<512x512xbf16>
    %cst = arith.constant dense<0.000000e+00> : vector<8x512xf32>
    %6 = tpu.matmul %3, %5, %cst {dimension_numbers = #tpu.dot_dimension_numbers<[1], [0], [0], [1], [0, 0, 1, 1], [], []>} : vector<8x512xbf16>, vector<512x512xbf16>, vector<8x512xf32> -> vector<8x512xf32>
    %c0_5 = arith.constant 0 : index
    %c0_6 = arith.constant 0 : index
    %c0_7 = arith.constant 0 : index
    %7 = vector.load %arg3[%c0_5, %c0_6, %c0_7] : memref<1x1x512xf32, #tpu.memory_space<vmem>>, vector<1x1x512xf32>
    %8 = vector.shape_cast %7 : vector<1x1x512xf32> to vector<1x512xf32>
    %9 = vector.broadcast %8 : vector<1x512xf32> to vector<8x512xf32>
    %10 = arith.addf %6, %9 : vector<8x512xf32>
    %cst_8 = arith.constant 2.000000e-01 : f32
    %11 = vector.broadcast %cst_8 : f32 to vector<8x512xf32>
    %12 = arith.mulf %11, %10 : vector<8x512xf32>
    %13 = arith.maximumf %10, %12 : vector<8x512xf32>
    %c3_i32 = arith.constant 3 : i32
    %14 = arith.cmpi slt, %arg0, %c3_i32 : i32
    %15 = arith.extui %14 : i1 to i32
    %c0_i32_9 = arith.constant 0 : i32
    %16 = arith.cmpi ne, %15, %c0_i32_9 : i32
    scf.if %16 {
      %20 = arith.truncf %13 : vector<8x512xf32> to vector<8x512xbf16>
      %c0_12 = arith.constant 0 : index
      %c0_13 = arith.constant 0 : index
      %21 = vector.load %arg5[%c0_12, %c0_13] : memref<8x512xbf16, #tpu.memory_space<vmem>>, vector<8x512xbf16>
      tpu.vector_store %arg5[%c0_12, %c0_13], %20 {strides = array<i32>} : memref<8x512xbf16, #tpu.memory_space<vmem>>, vector<8x512xbf16>,
    } else {
    }
    %c3_i32_10 = arith.constant 3 : i32
    %17 = arith.cmpi eq, %arg0, %c3_i32_10 : i32
    %18 = arith.extui %17 : i1 to i32
    %c0_i32_11 = arith.constant 0 : i32
    %19 = arith.cmpi ne, %18, %c0_i32_11 : i32
    scf.if %19 {
      %c0_12 = arith.constant 0 : index
      %c0_13 = arith.constant 0 : index
      %20 = vector.load %arg4[%c0_12, %c0_13] : memref<8x512xf32, #tpu.memory_space<vmem>>, vector<8x512xf32>
      tpu.vector_store %arg4[%c0_12, %c0_13], %13 {strides = array<i32>} : memref<8x512xf32, #tpu.memory_space<vmem>>, vector<8x512xf32>,
    } else {
    }
    return
  }
  func.func @transform_0(%arg0: i32) -> (i32, i32) {
    %c0_i32 = arith.constant 0 : i32
    %c0_i32_0 = arith.constant 0 : i32
    %c0_i32_1 = arith.constant 0 : i32
    return %c0_i32, %c0_i32_0 : i32, i32
  }
  func.func @transform_1(%arg0: i32) -> (i32, i32, i32) {
    %c0_i32 = arith.constant 0 : i32
    %c0_i32_0 = arith.constant 0 : i32
    %c0_i32_1 = arith.constant 0 : i32
    return %arg0, %c0_i32, %c0_i32_0 : i32, i32, i32
  }
  func.func @transform_2(%arg0: i32) -> (i32, i32, i32) {
    %c0_i32 = arith.constant 0 : i32
    %c0_i32_0 = arith.constant 0 : i32
    %c0_i32_1 = arith.constant 0 : i32
    return %arg0, %c0_i32, %c0_i32_0 : i32, i32, i32
  }
  func.func @transform_3(%arg0: i32) -> (i32, i32) {
    %c0_i32 = arith.constant 0 : i32
    %c0_i32_0 = arith.constant 0 : i32
    %c0_i32_1 = arith.constant 0 : i32
    return %c0_i32, %c0_i32_0 : i32, i32
  }
}

</mosaic_0001>

<llo_original>
// kernel: tpu_custom_call.1
$region0: #{tpu_custom_call.1}
  #allocation0 [shape = 'u32[]', space=smem, size = 0x4, offset = 0x4, fixed_abs, tag = 'smem constant byte address 0x4 - core index']
  #allocation1 [shape = 'u32[144,128]{1,0:T(1,128)}', space=vmem, size = 0x12000, scoped, tag = 'internal scratch']
  #allocation2 [shape = 'bf16[8,512]{1,0:T(8,128)(2,1)}', space=vmem, size = 0x2000, scoped, tag = 'scratch operand']
  %s0 = inlined_call_operand.hbm [shape: f32[8,512], index: 0, kind: input, shape index: {}]
  %s1 = inlined_call_operand.hbm [shape: bf16[4,512,512], index: 1, kind: input, shape index: {}]
  %s2 = inlined_call_operand.hbm [shape: f32[4,1,512], index: 2, kind: input, shape index: {}]
  %s3 = inlined_call_operand.hbm [shape: f32[8,512], index: 3, kind: output, shape index: {}]
  %s4 = sld [smem:[#allocation0]]
  $region69: #{tpu_custom_call.1} parent=0
    _
  %s6 = ssub.s32 1, %s4
  %s7 = scalar_select 0, %s6, %s4
  $region1: #{tpu_custom_call.1} parent=0
    #allocation3 [shape = 'u8[16384]{0}', space=vmem, size = 0x4000, scoped, tag = 'input window, operand 0, single buffered']
    #allocation4 [shape = 's32[2]{0}', space=sflag, size = 0x8, scoped, tag = 'scoped memory for tpu_custom_call.1']
    #allocation5 [shape = 's32[2]{0}', space=sflag, size = 0x8, scoped, tag = 'scoped memory for tpu_custom_call.1']
    #allocation6 [shape = 'u8[1048576]{0}', space=vmem, size = 0x100000, scoped, tag = 'input window, operand 1']
    #allocation7 [shape = 's32[2]{0}', space=sflag, size = 0x8, scoped, tag = 'scoped memory for tpu_custom_call.1']
    #allocation8 [shape = 'u8[4096]{0}', space=vmem, size = 0x1000, scoped, tag = 'input window, operand 2']
    #allocation9 [shape = 'u8[16384]{0}', space=vmem, size = 0x4000, scoped, tag = 'output window, operand 0, single buffered']
    %8 = vsyncpa [#allocation4], 0
    %9 = vsyncpa [#allocation7], 0
    %s10 = scalar_lea.sflag [#allocation7], 1
    %11 = vsyncpa %s10, 0
    %12 = vsyncpa [#allocation5], 0
    loop: start=0, step=1, limit=6
    $region2: #{tpu_custom_call.1} parent=1 // loop_pre_header
      _
    $region3: #{tpu_custom_call.1} parent=1 // loop_header
      %s14 = sphi 0, %s18
      %p15 = scmp.ge.s32.totalorder %s14, 6
      %s22 = sphi 0, %s22
      %s24 = sphi 0, %s22
      %s25 = sphi 0, %s24
      %s39 = sphi 0, %s25
      %s45 = sphi 0, %s47
      %s48 = sphi 0, %s45
      %s49 = sphi 0, %s48
      %s65 = sphi 0, %s49
      %s71 = sphi 0, %s73
      %s74 = sphi 0, %s71
      %s75 = sphi 0, %s74
      %s91 = sphi 0, %s75
      %s95 = sphi 0, %s95
      %s97 = sphi 0, %s95
      %s98 = sphi 0, %s97
      %s112 = sphi 0, %s98
    $region4: #{tpu_custom_call.1} parent=1 // loop_header_branch
      %17 = sbr.rel (%p15) target = $region8
    $region5: #{tpu_custom_call.1} parent=1 // loop_body
      %s19 = ssub.s32 %s14, 1
      %s20 = ssub.s32 %s14, 2
      %s21 = sadd.s32 %s14, 1
      %s23 = sadd.s32 %s22, 1
      %p26 = scmp.eq.s32.totalorder %s14, 3
      %p27 = scmp.ne.s32.totalorder %s22, %s24
      %p28 = scmp.eq.s32.totalorder %s14, 0
      %p29 = por %p27, %p28
      %p30 = scmp.ne.s32.totalorder %s22, %s24
      %p31 = scmp.eq.s32.totalorder %s19, 3
      %p32 = por %p30, %p31
      %p33 = scmp.ne.s32.totalorder %s24, %s25
      %p34 = scmp.eq.s32.totalorder %s19, 0
      %p35 = por %p33, %p34
      %p36 = scmp.ne.s32.totalorder %s24, %s25
      %p37 = scmp.eq.s32.totalorder %s20, 3
      %p38 = por %p36, %p37
      %p40 = scmp.ne.s32.totalorder %s25, %s39
      %p41 = scmp.eq.s32.totalorder %s20, 0
      %p42 = por %p40, %p41
      %s43 = ssub.s32 %s14, %s21
      %p44 = scmp.eq.s32.totalorder %s43, 0
      %s46 = sadd.s32 %s45, 1
      %s47 = scalar_select %p44, %s45, %s46
      %p50 = pneg %p44
      %p51 = scmp.eq.s32.totalorder %s14, 3
      %p52 = por %p50, %p51
      %p53 = scmp.ne.s32.totalorder %s45, %s48
      %p54 = scmp.eq.s32.totalorder %s14, 0
      %p55 = por %p53, %p54
      %p56 = scmp.ne.s32.totalorder %s45, %s48
      %p57 = scmp.eq.s32.totalorder %s19, 3
      %p58 = por %p56, %p57
      %p59 = scmp.ne.s32.totalorder %s48, %s49
      %p60 = scmp.eq.s32.totalorder %s19, 0
      %p61 = por %p59, %p60
      %p62 = scmp.ne.s32.totalorder %s48, %s49
      %p63 = scmp.eq.s32.totalorder %s20, 3
      %p64 = por %p62, %p63
      %p66 = scmp.ne.s32.totalorder %s49, %s65
      %p67 = scmp.eq.s32.totalorder %s20, 0
      %p68 = por %p66, %p67
      %s69 = ssub.s32 %s14, %s21
      %p70 = scmp.eq.s32.totalorder %s69, 0
      %s72 = sadd.s32 %s71, 1
      %s73 = scalar_select %p70, %s71, %s72
      %p76 = pneg %p70
      %p77 = scmp.eq.s32.totalorder %s14, 3
      %p78 = por %p76, %p77
      %p79 = scmp.ne.s32.totalorder %s71, %s74
      %p80 = scmp.eq.s32.totalorder %s14, 0
      %p81 = por %p79, %p80
      %p82 = scmp.ne.s32.totalorder %s71, %s74
      %p83 = scmp.eq.s32.totalorder %s19, 3
      %p84 = por %p82, %p83
      %p85 = scmp.ne.s32.totalorder %s74, %s75
      %p86 = scmp.eq.s32.totalorder %s19, 0
      %p87 = por %p85, %p86
      %p88 = scmp.ne.s32.totalorder %s74, %s75
      %p89 = scmp.eq.s32.totalorder %s20, 3
      %p90 = por %p88, %p89
      %p92 = scmp.ne.s32.totalorder %s75, %s91
      %p93 = scmp.eq.s32.totalorder %s20, 0
      %p94 = por %p92, %p93
      %s96 = sadd.s32 %s95, 1
      %p99 = scmp.eq.s32.totalorder %s14, 3
      %p100 = scmp.ne.s32.totalorder %s95, %s97
      %p101 = scmp.eq.s32.totalorder %s14, 0
      %p102 = por %p100, %p101
      %p103 = scmp.ne.s32.totalorder %s95, %s97
      %p104 = scmp.eq.s32.totalorder %s19, 3
      %p105 = por %p103, %p104
      %p106 = scmp.ne.s32.totalorder %s97, %s98
      %p107 = scmp.eq.s32.totalorder %s19, 0
      %p108 = por %p106, %p107
      %p109 = scmp.ne.s32.totalorder %s97, %s98
      %p110 = scmp.eq.s32.totalorder %s20, 3
      %p111 = por %p109, %p110
      %p113 = scmp.ne.s32.totalorder %s98, %s112
      %p114 = scmp.eq.s32.totalorder %s20, 0
      %p115 = por %p113, %p114
      %p116 = scmp.le.s32.totalorder 1, %s14
      %p117 = scmp.lt.s32.totalorder %s14, 5
      %p118 = pnand %p116, %p117
      %p119 = pneg %p118
      // Predicated region
      $region9: #{tpu_custom_call.1} parent=5 // pred_check
        _
      $region10: #{tpu_custom_call.1} parent=5 // pred_check_branch
        %121 = sbr.rel (%p118) target = $region12
      $region11: #{tpu_custom_call.1} parent=5 // pred_region
        %s122 = ssub.s32 %s14, 1
        // Predicated region
        $region13: #{tpu_custom_call.1} parent=11 // pred_check
          %p123 = pneg %p35
        $region14: #{tpu_custom_call.1} parent=11 // pred_check_branch
          %125 = sbr.rel (%p123) target = $region16
        $region15: #{tpu_custom_call.1} parent=11 // pred_region
          %s127 = ssub.s32 512, 512
          %128 = vsyncadd [#allocation4], %s127
          %s130 = sshll.u32 [#allocation3], 4
          %s131 = int_to_ptr.vmem [resolvable:$true] %s130
          %133 = dma.hbm_to_vmem [thread:$0]  %s0, 512, %s131, [#allocation4]
        $region16: #{tpu_custom_call.1} parent=11 // pred_fallthru
          _
      $region12: #{tpu_custom_call.1} parent=5 // pred_fallthru
        _
      %p134 = scmp.lt.s32.totalorder %s14, 4
      // Predicated region
      $region17: #{tpu_custom_call.1} parent=5 // pred_check
        %p135 = pneg %p134
      $region18: #{tpu_custom_call.1} parent=5 // pred_check_branch
        %137 = sbr.rel (%p135) target = $region20
      $region19: #{tpu_custom_call.1} parent=5 // pred_region
        // Predicated region
        $region21: #{tpu_custom_call.1} parent=19 // pred_check
          %p138 = pneg %p55
        $region22: #{tpu_custom_call.1} parent=19 // pred_check_branch
          %140 = sbr.rel (%p138) target = $region24
        $region23: #{tpu_custom_call.1} parent=19 // pred_region
          %s141 = sand.u32 %s14, 1
          %s142 = scalar_lea.sflag [#allocation7], %s141
          %s143 = sand.u32 %s45, 1
          %s144 = smul.addr %s143, 1024
          %s145 = scalar_lea.vmem [#allocation6], %s144
          %s147 = ssub.s32 16384, 16384
          %148 = vsyncadd %s142, %s147
          %s149 = smul.addr %s14, 256
          %s150 = smul.addr %s149, 64
          %s151 = scalar_lea.hbm %s1, %s150
          %s152 = sshll.u32 %s145, 4
          %s153 = int_to_ptr.vmem [resolvable:$true] %s152
          %158 = dma.hbm_to_vmem [thread:$0]  %s151, 16384, %s153, %s142, 256, 256, 16
        $region24: #{tpu_custom_call.1} parent=19 // pred_fallthru
          _
        // Predicated region
        $region25: #{tpu_custom_call.1} parent=19 // pred_check
          %p159 = pneg %p81
        $region26: #{tpu_custom_call.1} parent=19 // pred_check_branch
          %161 = sbr.rel (%p159) target = $region28
        $region27: #{tpu_custom_call.1} parent=19 // pred_region
          %s162 = sand.u32 %s14, 1
          %s163 = scalar_lea.sflag [#allocation7], %s162
          %s164 = sand.u32 %s71, 1
          %s165 = smul.addr %s164, 4
          %s166 = scalar_lea.vmem [#allocation8], %s165
          %s168 = ssub.s32 64, 64
          %169 = vsyncadd %s163, %s168
          %s170 = smul.addr %s14, 4
          %s171 = smul.addr %s170, 16
          %s172 = scalar_lea.hbm %s2, %s171
          %s174 = sshll.u32 %s166, 4
          %s175 = int_to_ptr.vmem [resolvable:$true] %s174
          %177 = dma.hbm_to_vmem [thread:$0]  %s172, 64, %s175, %s163
        $region28: #{tpu_custom_call.1} parent=19 // pred_fallthru
          _
      $region20: #{tpu_custom_call.1} parent=5 // pred_fallthru
        _
      %p178 = scmp.le.s32.totalorder 1, %s14
      %p179 = scmp.lt.s32.totalorder %s14, 5
      %p180 = pnand %p178, %p179
      %p181 = pneg %p180
      // Predicated region
      $region29: #{tpu_custom_call.1} parent=5 // pred_check
        _
      $region30: #{tpu_custom_call.1} parent=5 // pred_check_branch
        %183 = sbr.rel (%p180) target = $region32
      $region31: #{tpu_custom_call.1} parent=5 // pred_region
        %s184 = ssub.s32 %s14, 1
        // Predicated region
        $region33: #{tpu_custom_call.1} parent=31 // pred_check
          %p185 = pneg %p35
        $region34: #{tpu_custom_call.1} parent=31 // pred_check_branch
          %187 = sbr.rel (%p185) target = $region36
        $region35: #{tpu_custom_call.1} parent=31 // pred_region
          %188 = dma.done [#allocation4], 512
        $region36: #{tpu_custom_call.1} parent=31 // pred_fallthru
          _
        %s189 = sand.u32 %s19, 1
        %s190 = scalar_lea.sflag [#allocation7], %s189
        %s191 = sand.u32 %s48, 1
        %s192 = smul.addr %s191, 1024
        %s193 = scalar_lea.vmem [#allocation6], %s192
        // Predicated region
        $region37: #{tpu_custom_call.1} parent=31 // pred_check
          %p194 = pneg %p61
        $region38: #{tpu_custom_call.1} parent=31 // pred_check_branch
          %196 = sbr.rel (%p194) target = $region40
        $region39: #{tpu_custom_call.1} parent=31 // pred_region
          %197 = dma.done %s190, 16384
        $region40: #{tpu_custom_call.1} parent=31 // pred_fallthru
          _
        %s198 = sand.u32 %s19, 1
        %s199 = scalar_lea.sflag [#allocation7], %s198
        %s200 = sand.u32 %s74, 1
        %s201 = smul.addr %s200, 4
        %s202 = scalar_lea.vmem [#allocation8], %s201
        // Predicated region
        $region41: #{tpu_custom_call.1} parent=31 // pred_check
          %p203 = pneg %p87
        $region42: #{tpu_custom_call.1} parent=31 // pred_check_branch
          %205 = sbr.rel (%p203) target = $region44
        $region43: #{tpu_custom_call.1} parent=31 // pred_region
          %206 = dma.done %s199, 64
        $region44: #{tpu_custom_call.1} parent=31 // pred_fallthru
          _
        %p207 = pneg %p35
        %p208 = pneg %p32
        %s209 = sand.u32 %s19, 1
        %s210 = scalar_lea.sflag [#allocation7], %s209
        %s211 = sand.u32 %s48, 1
        %s212 = smul.addr %s211, 1024
        %s213 = scalar_lea.vmem [#allocation6], %s212
        %p214 = pneg %p61
        %p215 = pneg %p58
        %s216 = sand.u32 %s19, 1
        %s217 = scalar_lea.sflag [#allocation7], %s216
        %s218 = sand.u32 %s74, 1
        %s219 = smul.addr %s218, 4
        %s220 = scalar_lea.vmem [#allocation8], %s219
        %p221 = pneg %p87
        %p222 = pneg %p84
        %p223 = pneg %p108
        %p224 = pneg %p105
        %p225 = scmp.eq.s32.totalorder %s19, 0
        // Predicated region
        $region45: #{tpu_custom_call.1} parent=31 // pred_check
          %p226 = pneg %p225
        $region46: #{tpu_custom_call.1} parent=31 // pred_check_branch
          %228 = sbr.rel (%p226) target = $region48
        $region47: #{tpu_custom_call.1} parent=31 // pred_region
          %v229 = vld [vmem:[#allocation3] sm:$0xff]
          %v230 = vld [vmem:[#allocation3 + $0x8] sm:$0xff]
          %v231 = vld [vmem:[#allocation3 + $0x10] sm:$0xff]
          %v232 = vld [vmem:[#allocation3 + $0x18] sm:$0xff]
          %v233 = vmul.f32 %v229, %v229
          %v234 = vmul.f32 %v230, %v230
          %v235 = vmul.f32 %v231, %v231
          %v236 = vmul.f32 %v232, %v232
          %v237 = vadd.f32 %v233, %v234
          %v238 = vadd.f32 %v237, %v235
          %v239 = vadd.f32 %v238, %v236
          %240 = vadd.xlane.f32.xlu0 %v239
          %v241 = vpop.xlane.xlu0 %240
          %v242 = vrcp.pop 512.0
          %v243 = vmul.f32 %v241, %v242
          %v244 = vadd.f32 %v243, 1e-08
          %v245 = vrsqrt.pop %v244
          %v246 = vmul.f32 %v229, %v245
          %v247 = vmul.f32 %v230, %v245
          %v248 = vmul.f32 %v231, %v245
          %v249 = vmul.f32 %v232, %v245
          %v250 = vpack.c.bf16 %v246, %v246
          %v251 = vpack.c.bf16 %v247, %v247
          %v252 = vpack.c.bf16 %v248, %v248
          %v253 = vpack.c.bf16 %v249, %v249
          %v258 = vunpack.c.l.b16 %v250
          %v259 = vunpack.c.l.b16 %v251
          %v260 = vunpack.c.l.b16 %v252
          %v261 = vunpack.c.l.b16 %v253
          %v262 = vpack.c.b16 %v259, %v258
          %v263 = vpack.c.b16 %v261, %v260
          %266 = vst [vmem:[#allocation2] sm:$0xff] %v262
          %267 = vst [vmem:[#allocation2 + $0x8] sm:$0xff] %v263
        $region48: #{tpu_custom_call.1} parent=31 // pred_fallthru
          _
        %v268 = vld [vmem:[#allocation2] sm:$0xff]
        %v269 = vld [vmem:[#allocation2 + $0x8] sm:$0xff]
        %v270 = vld [vmem:[%s193] sm:$0xff]
        %v271 = vld [vmem:[%s193 + $0x8] sm:$0xff]
        %v272 = vld [vmem:[%s193 + $0x10] sm:$0xff]
        %v273 = vld [vmem:[%s193 + $0x18] sm:$0xff]
        %v274 = vld [vmem:[%s193 + $0x20] sm:$0xff]
        %v275 = vld [vmem:[%s193 + $0x28] sm:$0xff]
        %v276 = vld [vmem:[%s193 + $0x30] sm:$0xff]
        %v277 = vld [vmem:[%s193 + $0x38] sm:$0xff]
        %v278 = vld [vmem:[%s193 + $0x40] sm:$0xff]
        %v279 = vld [vmem:[%s193 + $0x48] sm:$0xff]
        %v280 = vld [vmem:[%s193 + $0x50] sm:$0xff]
        %v281 = vld [vmem:[%s193 + $0x58] sm:$0xff]
        %v282 = vld [vmem:[%s193 + $0x60] sm:$0xff]
        %v283 = vld [vmem:[%s193 + $0x68] sm:$0xff]
        %v284 = vld [vmem:[%s193 + $0x70] sm:$0xff]
        %v285 = vld [vmem:[%s193 + $0x78] sm:$0xff]
        %v286 = vld [vmem:[%s193 + $0x80] sm:$0xff]
        %v287 = vld [vmem:[%s193 + $0x88] sm:$0xff]
        %v288 = vld [vmem:[%s193 + $0x90] sm:$0xff]
        %v289 = vld [vmem:[%s193 + $0x98] sm:$0xff]
        %v290 = vld [vmem:[%s193 + $0xa0] sm:$0xff]
        %v291 = vld [vmem:[%s193 + $0xa8] sm:$0xff]
        %v292 = vld [vmem:[%s193 + $0xb0] sm:$0xff]
        %v293 = vld [vmem:[%s193 + $0xb8] sm:$0xff]
        %v294 = vld [vmem:[%s193 + $0xc0] sm:$0xff]
        %v295 = vld [vmem:[%s193 + $0xc8] sm:$0xff]
        %v296 = vld [vmem:[%s193 + $0xd0] sm:$0xff]
        %v297 = vld [vmem:[%s193 + $0xd8] sm:$0xff]
        %v298 = vld [vmem:[%s193 + $0xe0] sm:$0xff]
        %v299 = vld [vmem:[%s193 + $0xe8] sm:$0xff]
        %v300 = vld [vmem:[%s193 + $0xf0] sm:$0xff]
        %v301 = vld [vmem:[%s193 + $0xf8] sm:$0xff]
        %v302 = vld [vmem:[%s193 + $0x100] sm:$0xff]
        %v303 = vld [vmem:[%s193 + $0x108] sm:$0xff]
        %v304 = vld [vmem:[%s193 + $0x110] sm:$0xff]
        %v305 = vld [vmem:[%s193 + $0x118] sm:$0xff]
        %v306 = vld [vmem:[%s193 + $0x120] sm:$0xff]
        %v307 = vld [vmem:[%s193 + $0x128] sm:$0xff]
        %v308 = vld [vmem:[%s193 + $0x130] sm:$0xff]
        %v309 = vld [vmem:[%s193 + $0x138] sm:$0xff]
        %v310 = vld [vmem:[%s193 + $0x140] sm:$0xff]
        %v311 = vld [vmem:[%s193 + $0x148] sm:$0xff]
        %v312 = vld [vmem:[%s193 + $0x150] sm:$0xff]
        %v313 = vld [vmem:[%s193 + $0x158] sm:$0xff]
        %v314 = vld [vmem:[%s193 + $0x160] sm:$0xff]
        %v315 = vld [vmem:[%s193 + $0x168] sm:$0xff]
        %v316 = vld [vmem:[%s193 + $0x170] sm:$0xff]
        %v317 = vld [vmem:[%s193 + $0x178] sm:$0xff]
        %v318 = vld [vmem:[%s193 + $0x180] sm:$0xff]
        %v319 = vld [vmem:[%s193 + $0x188] sm:$0xff]
        %v320 = vld [vmem:[%s193 + $0x190] sm:$0xff]
        %v321 = vld [vmem:[%s193 + $0x198] sm:$0xff]
        %v322 = vld [vmem:[%s193 + $0x1a0] sm:$0xff]
        %v323 = vld [vmem:[%s193 + $0x1a8] sm:$0xff]
        %v324 = vld [vmem:[%s193 + $0x1b0] sm:$0xff]
        %v325 = vld [vmem:[%s193 + $0x1b8] sm:$0xff]
        %v326 = vld [vmem:[%s193 + $0x1c0] sm:$0xff]
        %v327 = vld [vmem:[%s193 + $0x1c8] sm:$0xff]
        %v328 = vld [vmem:[%s193 + $0x1d0] sm:$0xff]
        %v329 = vld [vmem:[%s193 + $0x1d8] sm:$0xff]
        %v330 = vld [vmem:[%s193 + $0x1e0] sm:$0xff]
        %v331 = vld [vmem:[%s193 + $0x1e8] sm:$0xff]
        %v332 = vld [vmem:[%s193 + $0x1f0] sm:$0xff]
        %v333 = vld [vmem:[%s193 + $0x1f8] sm:$0xff]
        %v334 = vld [vmem:[%s193 + $0x200] sm:$0xff]
        %v335 = vld [vmem:[%s193 + $0x208] sm:$0xff]
        %v336 = vld [vmem:[%s193 + $0x210] sm:$0xff]
        %v337 = vld [vmem:[%s193 + $0x218] sm:$0xff]
        %v338 = vld [vmem:[%s193 + $0x220] sm:$0xff]
        %v339 = vld [vmem:[%s193 + $0x228] sm:$0xff]
        %v340 = vld [vmem:[%s193 + $0x230] sm:$0xff]
        %v341 = vld [vmem:[%s193 + $0x238] sm:$0xff]
        %v342 = vld [vmem:[%s193 + $0x240] sm:$0xff]
        %v343 = vld [vmem:[%s193 + $0x248] sm:$0xff]
        %v344 = vld [vmem:[%s193 + $0x250] sm:$0xff]
        %v345 = vld [vmem:[%s193 + $0x258] sm:$0xff]
        %v346 = vld [vmem:[%s193 + $0x260] sm:$0xff]
        %v347 = vld [vmem:[%s193 + $0x268] sm:$0xff]
        %v348 = vld [vmem:[%s193 + $0x270] sm:$0xff]
        %v349 = vld [vmem:[%s193 + $0x278] sm:$0xff]
        %v350 = vld [vmem:[%s193 + $0x280] sm:$0xff]
        %v351 = vld [vmem:[%s193 + $0x288] sm:$0xff]
        %v352 = vld [vmem:[%s193 + $0x290] sm:$0xff]
        %v353 = vld [vmem:[%s193 + $0x298] sm:$0xff]
        %v354 = vld [vmem:[%s193 + $0x2a0] sm:$0xff]
        %v355 = vld [vmem:[%s193 + $0x2a8] sm:$0xff]
        %v356 = vld [vmem:[%s193 + $0x2b0] sm:$0xff]
        %v357 = vld [vmem:[%s193 + $0x2b8] sm:$0xff]
        %v358 = vld [vmem:[%s193 + $0x2c0] sm:$0xff]
        %v359 = vld [vmem:[%s193 + $0x2c8] sm:$0xff]
        %v360 = vld [vmem:[%s193 + $0x2d0] sm:$0xff]
        %v361 = vld [vmem:[%s193 + $0x2d8] sm:$0xff]
        %v362 = vld [vmem:[%s193 + $0x2e0] sm:$0xff]
        %v363 = vld [vmem:[%s193 + $0x2e8] sm:$0xff]
        %v364 = vld [vmem:[%s193 + $0x2f0] sm:$0xff]
        %v365 = vld [vmem:[%s193 + $0x2f8] sm:$0xff]
        %v366 = vld [vmem:[%s193 + $0x300] sm:$0xff]
        %v367 = vld [vmem:[%s193 + $0x308] sm:$0xff]
        %v368 = vld [vmem:[%s193 + $0x310] sm:$0xff]
        %v369 = vld [vmem:[%s193 + $0x318] sm:$0xff]
        %v370 = vld [vmem:[%s193 + $0x320] sm:$0xff]
        %v371 = vld [vmem:[%s193 + $0x328] sm:$0xff]
        %v372 = vld [vmem:[%s193 + $0x330] sm:$0xff]
        %v373 = vld [vmem:[%s193 + $0x338] sm:$0xff]
        %v374 = vld [vmem:[%s193 + $0x340] sm:$0xff]
        %v375 = vld [vmem:[%s193 + $0x348] sm:$0xff]
        %v376 = vld [vmem:[%s193 + $0x350] sm:$0xff]
        %v377 = vld [vmem:[%s193 + $0x358] sm:$0xff]
        %v378 = vld [vmem:[%s193 + $0x360] sm:$0xff]
        %v379 = vld [vmem:[%s193 + $0x368] sm:$0xff]
        %v380 = vld [vmem:[%s193 + $0x370] sm:$0xff]
        %v381 = vld [vmem:[%s193 + $0x378] sm:$0xff]
        %v382 = vld [vmem:[%s193 + $0x380] sm:$0xff]
        %v383 = vld [vmem:[%s193 + $0x388] sm:$0xff]
        %v384 = vld [vmem:[%s193 + $0x390] sm:$0xff]
        %v385 = vld [vmem:[%s193 + $0x398] sm:$0xff]
        %v386 = vld [vmem:[%s193 + $0x3a0] sm:$0xff]
        %v387 = vld [vmem:[%s193 + $0x3a8] sm:$0xff]
        %v388 = vld [vmem:[%s193 + $0x3b0] sm:$0xff]
        %v389 = vld [vmem:[%s193 + $0x3b8] sm:$0xff]
        %v390 = vld [vmem:[%s193 + $0x3c0] sm:$0xff]
        %v391 = vld [vmem:[%s193 + $0x3c8] sm:$0xff]
        %v392 = vld [vmem:[%s193 + $0x3d0] sm:$0xff]
        %v393 = vld [vmem:[%s193 + $0x3d8] sm:$0xff]
        %v394 = vld [vmem:[%s193 + $0x3e0] sm:$0xff]
        %v395 = vld [vmem:[%s193 + $0x3e8] sm:$0xff]
        %v396 = vld [vmem:[%s193 + $0x3f0] sm:$0xff]
        %v397 = vld [vmem:[%s193 + $0x3f8] sm:$0xff]
        %v398 = vld [vmem:[%s202] sm:$0xf]
        %v400 = vlaneseq
        %v401 = vshrl.u32 %v400, 7
        %v402 = vsub.s32 0, %v401
        %v403 = vrot.slane %v398, %v402
        %v404 = vlaneseq
        %v405 = vshrl.u32 %v404, 7
        %v406 = vsub.s32 1, %v405
        %v407 = vrot.slane %v398, %v406
        %v408 = vlaneseq
        %v409 = vshrl.u32 %v408, 7
        %v410 = vsub.s32 2, %v409
        %v411 = vrot.slane %v398, %v410
        %v412 = vlaneseq
        %v413 = vshrl.u32 %v412, 7
        %v414 = vsub.s32 3, %v413
        %v415 = vrot.slane %v398, %v414
        %v422 = vunpack.c.l.b16 %v268
        %v423 = vunpack.c.h.b16 %v268
        %v424 = vunpack.c.l.b16 %v269
        %v425 = vunpack.c.h.b16 %v269
        %v426 = vpack.c.b16 %v422, %v422
        %v427 = vpack.c.b16 %v423, %v423
        %v428 = vpack.c.b16 %v424, %v424
        %v429 = vpack.c.b16 %v425, %v425
        %v562 = vunpack.c.l.b16 %v270
        %v563 = vunpack.c.h.b16 %v270
        %v564 = vunpack.c.l.b16 %v271
        %v565 = vunpack.c.h.b16 %v271
        %v566 = vunpack.c.l.b16 %v272
        %v567 = vunpack.c.h.b16 %v272
        %v568 = vunpack.c.l.b16 %v273
        %v569 = vunpack.c.h.b16 %v273
        %v570 = vunpack.c.l.b16 %v274
        %v571 = vunpack.c.h.b16 %v274
        %v572 = vunpack.c.l.b16 %v275
        %v573 = vunpack.c.h.b16 %v275
        %v574 = vunpack.c.l.b16 %v276
        %v575 = vunpack.c.h.b16 %v276
        %v576 = vunpack.c.l.b16 %v277
        %v577 = vunpack.c.h.b16 %v277
        %v578 = vunpack.c.l.b16 %v278
        %v579 = vunpack.c.h.b16 %v278
        %v580 = vunpack.c.l.b16 %v279
        %v581 = vunpack.c.h.b16 %v279
        %v582 = vunpack.c.l.b16 %v280
        %v583 = vunpack.c.h.b16 %v280
        %v584 = vunpack.c.l.b16 %v281
        %v585 = vunpack.c.h.b16 %v281
        %v586 = vunpack.c.l.b16 %v282
        %v587 = vunpack.c.h.b16 %v282
        %v588 = vunpack.c.l.b16 %v283
        %v589 = vunpack.c.h.b16 %v283
        %v590 = vunpack.c.l.b16 %v284
        %v591 = vunpack.c.h.b16 %v284
        %v592 = vunpack.c.l.b16 %v285
        %v593 = vunpack.c.h.b16 %v285
        %v594 = vunpack.c.l.b16 %v286
        %v595 = vunpack.c.h.b16 %v286
        %v596 = vunpack.c.l.b16 %v287
        %v597 = vunpack.c.h.b16 %v287
        %v598 = vunpack.c.l.b16 %v288
        %v599 = vunpack.c.h.b16 %v288
        %v600 = vunpack.c.l.b16 %v289
        %v601 = vunpack.c.h.b16 %v289
        %v602 = vunpack.c.l.b16 %v290
        %v603 = vunpack.c.h.b16 %v290
        %v604 = vunpack.c.l.b16 %v291
        %v605 = vunpack.c.h.b16 %v291
        %v606 = vunpack.c.l.b16 %v292
        %v607 = vunpack.c.h.b16 %v292
        %v608 = vunpack.c.l.b16 %v293
        %v609 = vunpack.c.h.b16 %v293
        %v610 = vunpack.c.l.b16 %v294
        %v611 = vunpack.c.h.b16 %v294
        %v612 = vunpack.c.l.b16 %v295
        %v613 = vunpack.c.h.b16 %v295
        %v614 = vunpack.c.l.b16 %v296
        %v615 = vunpack.c.h.b16 %v296
        %v616 = vunpack.c.l.b16 %v297
        %v617 = vunpack.c.h.b16 %v297
        %v618 = vunpack.c.l.b16 %v298
        %v619 = vunpack.c.h.b16 %v298
        %v620 = vunpack.c.l.b16 %v299
        %v621 = vunpack.c.h.b16 %v299
        %v622 = vunpack.c.l.b16 %v300
        %v623 = vunpack.c.h.b16 %v300
        %v624 = vunpack.c.l.b16 %v301
        %v625 = vunpack.c.h.b16 %v301
        %v626 = vunpack.c.l.b16 %v302
        %v627 = vunpack.c.h.b16 %v302
        %v628 = vunpack.c.l.b16 %v303
        %v629 = vunpack.c.h.b16 %v303
        %v630 = vunpack.c.l.b16 %v304
        %v631 = vunpack.c.h.b16 %v304
        %v632 = vunpack.c.l.b16 %v305
        %v633 = vunpack.c.h.b16 %v305
        %v634 = vunpack.c.l.b16 %v306
        %v635 = vunpack.c.h.b16 %v306
        %v636 = vunpack.c.l.b16 %v307
        %v637 = vunpack.c.h.b16 %v307
        %v638 = vunpack.c.l.b16 %v308
        %v639 = vunpack.c.h.b16 %v308
        %v640 = vunpack.c.l.b16 %v309
        %v641 = vunpack.c.h.b16 %v309
        %v642 = vunpack.c.l.b16 %v310
        %v643 = vunpack.c.h.b16 %v310
        %v644 = vunpack.c.l.b16 %v311
        %v645 = vunpack.c.h.b16 %v311
        %v646 = vunpack.c.l.b16 %v312
        %v647 = vunpack.c.h.b16 %v312
        %v648 = vunpack.c.l.b16 %v313
        %v649 = vunpack.c.h.b16 %v313
        %v650 = vunpack.c.l.b16 %v314
        %v651 = vunpack.c.h.b16 %v314
        %v652 = vunpack.c.l.b16 %v315
        %v653 = vunpack.c.h.b16 %v315
        %v654 = vunpack.c.l.b16 %v316
        %v655 = vunpack.c.h.b16 %v316
        %v656 = vunpack.c.l.b16 %v317
        %v657 = vunpack.c.h.b16 %v317
        %v658 = vunpack.c.l.b16 %v318
        %v659 = vunpack.c.h.b16 %v318
        %v660 = vunpack.c.l.b16 %v319
        %v661 = vunpack.c.h.b16 %v319
        %v662 = vunpack.c.l.b16 %v320
        %v663 = vunpack.c.h.b16 %v320
        %v664 = vunpack.c.l.b16 %v321
        %v665 = vunpack.c.h.b16 %v321
        %v666 = vunpack.c.l.b16 %v322
        %v667 = vunpack.c.h.b16 %v322
        %v668 = vunpack.c.l.b16 %v323
        %v669 = vunpack.c.h.b16 %v323
        %v670 = vunpack.c.l.b16 %v324
        %v671 = vunpack.c.h.b16 %v324
        %v672 = vunpack.c.l.b16 %v325
        %v673 = vunpack.c.h.b16 %v325
        %v674 = vunpack.c.l.b16 %v326
        %v675 = vunpack.c.h.b16 %v326
        %v676 = vunpack.c.l.b16 %v327
        %v677 = vunpack.c.h.b16 %v327
        %v678 = vunpack.c.l.b16 %v328
        %v679 = vunpack.c.h.b16 %v328
        %v680 = vunpack.c.l.b16 %v329
        %v681 = vunpack.c.h.b16 %v329
        %v682 = vunpack.c.l.b16 %v330
        %v683 = vunpack.c.h.b16 %v330
        %v684 = vunpack.c.l.b16 %v331
        %v685 = vunpack.c.h.b16 %v331
        %v686 = vunpack.c.l.b16 %v332
        %v687 = vunpack.c.h.b16 %v332
        %v688 = vunpack.c.l.b16 %v333
        %v689 = vunpack.c.h.b16 %v333
        %v690 = vunpack.c.l.b16 %v334
        %v691 = vunpack.c.h.b16 %v334
        %v692 = vunpack.c.l.b16 %v335
        %v693 = vunpack.c.h.b16 %v335
        %v694 = vunpack.c.l.b16 %v336
        %v695 = vunpack.c.h.b16 %v336
        %v696 = vunpack.c.l.b16 %v337
        %v697 = vunpack.c.h.b16 %v337
        %v698 = vunpack.c.l.b16 %v338
        %v699 = vunpack.c.h.b16 %v338
        %v700 = vunpack.c.l.b16 %v339
        %v701 = vunpack.c.h.b16 %v339
        %v702 = vunpack.c.l.b16 %v340
        %v703 = vunpack.c.h.b16 %v340
        %v704 = vunpack.c.l.b16 %v341
        %v705 = vunpack.c.h.b16 %v341
        %v706 = vunpack.c.l.b16 %v342
        %v707 = vunpack.c.h.b16 %v342
        %v708 = vunpack.c.l.b16 %v343
        %v709 = vunpack.c.h.b16 %v343
        %v710 = vunpack.c.l.b16 %v344
        %v711 = vunpack.c.h.b16 %v344
        %v712 = vunpack.c.l.b16 %v345
        %v713 = vunpack.c.h.b16 %v345
        %v714 = vunpack.c.l.b16 %v346
        %v715 = vunpack.c.h.b16 %v346
        %v716 = vunpack.c.l.b16 %v347
        %v717 = vunpack.c.h.b16 %v347
        %v718 = vunpack.c.l.b16 %v348
        %v719 = vunpack.c.h.b16 %v348
        %v720 = vunpack.c.l.b16 %v349
        %v721 = vunpack.c.h.b16 %v349
        %v722 = vunpack.c.l.b16 %v350
        %v723 = vunpack.c.h.b16 %v350
        %v724 = vunpack.c.l.b16 %v351
        %v725 = vunpack.c.h.b16 %v351
        %v726 = vunpack.c.l.b16 %v352
        %v727 = vunpack.c.h.b16 %v352
        %v728 = vunpack.c.l.b16 %v353
        %v729 = vunpack.c.h.b16 %v353
        %v730 = vunpack.c.l.b16 %v354
        %v731 = vunpack.c.h.b16 %v354
        %v732 = vunpack.c.l.b16 %v355
        %v733 = vunpack.c.h.b16 %v355
        %v734 = vunpack.c.l.b16 %v356
        %v735 = vunpack.c.h.b16 %v356
        %v736 = vunpack.c.l.b16 %v357
        %v737 = vunpack.c.h.b16 %v357
        %v738 = vunpack.c.l.b16 %v358
        %v739 = vunpack.c.h.b16 %v358
        %v740 = vunpack.c.l.b16 %v359
        %v741 = vunpack.c.h.b16 %v359
        %v742 = vunpack.c.l.b16 %v360
        %v743 = vunpack.c.h.b16 %v360
        %v744 = vunpack.c.l.b16 %v361
        %v745 = vunpack.c.h.b16 %v361
        %v746 = vunpack.c.l.b16 %v362
        %v747 = vunpack.c.h.b16 %v362
        %v748 = vunpack.c.l.b16 %v363
        %v749 = vunpack.c.h.b16 %v363
        %v750 = vunpack.c.l.b16 %v364
        %v751 = vunpack.c.h.b16 %v364
        %v752 = vunpack.c.l.b16 %v365
        %v753 = vunpack.c.h.b16 %v365
        %v754 = vunpack.c.l.b16 %v366
        %v755 = vunpack.c.h.b16 %v366
        %v756 = vunpack.c.l.b16 %v367
        %v757 = vunpack.c.h.b16 %v367
        %v758 = vunpack.c.l.b16 %v368
        %v759 = vunpack.c.h.b16 %v368
        %v760 = vunpack.c.l.b16 %v369
        %v761 = vunpack.c.h.b16 %v369
        %v762 = vunpack.c.l.b16 %v370
        %v763 = vunpack.c.h.b16 %v370
        %v764 = vunpack.c.l.b16 %v371
        %v765 = vunpack.c.h.b16 %v371
        %v766 = vunpack.c.l.b16 %v372
        %v767 = vunpack.c.h.b16 %v372
        %v768 = vunpack.c.l.b16 %v373
        %v769 = vunpack.c.h.b16 %v373
        %v770 = vunpack.c.l.b16 %v374
        %v771 = vunpack.c.h.b16 %v374
        %v772 = vunpack.c.l.b16 %v375
        %v773 = vunpack.c.h.b16 %v375
        %v774 = vunpack.c.l.b16 %v376
        %v775 = vunpack.c.h.b16 %v376
        %v776 = vunpack.c.l.b16 %v377
        %v777 = vunpack.c.h.b16 %v377
        %v778 = vunpack.c.l.b16 %v378
        %v779 = vunpack.c.h.b16 %v378
        %v780 = vunpack.c.l.b16 %v379
        %v781 = vunpack.c.h.b16 %v379
        %v782 = vunpack.c.l.b16 %v380
        %v783 = vunpack.c.h.b16 %v380
        %v784 = vunpack.c.l.b16 %v381
        %v785 = vunpack.c.h.b16 %v381
        %v786 = vunpack.c.l.b16 %v382
        %v787 = vunpack.c.h.b16 %v382
        %v788 = vunpack.c.l.b16 %v383
        %v789 = vunpack.c.h.b16 %v383
        %v790 = vunpack.c.l.b16 %v384
        %v791 = vunpack.c.h.b16 %v384
        %v792 = vunpack.c.l.b16 %v385
        %v793 = vunpack.c.h.b16 %v385
        %v794 = vunpack.c.l.b16 %v386
        %v795 = vunpack.c.h.b16 %v386
        %v796 = vunpack.c.l.b16 %v387
        %v797 = vunpack.c.h.b16 %v387
        %v798 = vunpack.c.l.b16 %v388
        %v799 = vunpack.c.h.b16 %v388
        %v800 = vunpack.c.l.b16 %v389
        %v801 = vunpack.c.h.b16 %v389
        %v802 = vunpack.c.l.b16 %v390
        %v803 = vunpack.c.h.b16 %v390
        %v804 = vunpack.c.l.b16 %v391
        %v805 = vunpack.c.h.b16 %v391
        %v806 = vunpack.c.l.b16 %v392
        %v807 = vunpack.c.h.b16 %v392
        %v808 = vunpack.c.l.b16 %v393
        %v809 = vunpack.c.h.b16 %v393
        %v810 = vunpack.c.l.b16 %v394
        %v811 = vunpack.c.h.b16 %v394
        %v812 = vunpack.c.l.b16 %v395
        %v813 = vunpack.c.h.b16 %v395
        %v814 = vunpack.c.l.b16 %v396
        %v815 = vunpack.c.h.b16 %v396
        %v816 = vunpack.c.l.b16 %v397
        %v817 = vunpack.c.h.b16 %v397
        %v818 = vpack.c.b16 %v566, %v562
        %v819 = vpack.c.b16 %v567, %v563
        %v820 = vpack.c.b16 %v568, %v564
        %v821 = vpack.c.b16 %v569, %v565
        %v822 = vpack.c.b16 %v574, %v570
        %v823 = vpack.c.b16 %v575, %v571
        %v824 = vpack.c.b16 %v576, %v572
        %v825 = vpack.c.b16 %v577, %v573
        %v826 = vpack.c.b16 %v582, %v578
        %v827 = vpack.c.b16 %v583, %v579
        %v828 = vpack.c.b16 %v584, %v580
        %v829 = vpack.c.b16 %v585, %v581
        %v830 = vpack.c.b16 %v590, %v586
        %v831 = vpack.c.b16 %v591, %v587
        %v832 = vpack.c.b16 %v592, %v588
        %v833 = vpack.c.b16 %v593, %v589
        %v834 = vpack.c.b16 %v598, %v594
        %v835 = vpack.c.b16 %v599, %v595
        %v836 = vpack.c.b16 %v600, %v596
        %v837 = vpack.c.b16 %v601, %v597
        %v838 = vpack.c.b16 %v606, %v602
        %v839 = vpack.c.b16 %v607, %v603
        %v840 = vpack.c.b16 %v608, %v604
        %v841 = vpack.c.b16 %v609, %v605
        %v842 = vpack.c.b16 %v614, %v610
        %v843 = vpack.c.b16 %v615, %v611
        %v844 = vpack.c.b16 %v616, %v612
        %v845 = vpack.c.b16 %v617, %v613
        %v846 = vpack.c.b16 %v622, %v618
        %v847 = vpack.c.b16 %v623, %v619
        %v848 = vpack.c.b16 %v624, %v620
        %v849 = vpack.c.b16 %v625, %v621
        %v850 = vpack.c.b16 %v630, %v626
        %v851 = vpack.c.b16 %v631, %v627
        %v852 = vpack.c.b16 %v632, %v628
        %v853 = vpack.c.b16 %v633, %v629
        %v854 = vpack.c.b16 %v638, %v634
        %v855 = vpack.c.b16 %v639, %v635
        %v856 = vpack.c.b16 %v640, %v636
        %v857 = vpack.c.b16 %v641, %v637
        %v858 = vpack.c.b16 %v646, %v642
        %v859 = vpack.c.b16 %v647, %v643
        %v860 = vpack.c.b16 %v648, %v644
        %v861 = vpack.c.b16 %v649, %v645
        %v862 = vpack.c.b16 %v654, %v650
        %v863 = vpack.c.b16 %v655, %v651
        %v864 = vpack.c.b16 %v656, %v652
        %v865 = vpack.c.b16 %v657, %v653
        %v866 = vpack.c.b16 %v662, %v658
        %v867 = vpack.c.b16 %v663, %v659
        %v868 = vpack.c.b16 %v664, %v660
        %v869 = vpack.c.b16 %v665, %v661
        %v870 = vpack.c.b16 %v670, %v666
        %v871 = vpack.c.b16 %v671, %v667
        %v872 = vpack.c.b16 %v672, %v668
        %v873 = vpack.c.b16 %v673, %v669
        %v874 = vpack.c.b16 %v678, %v674
        %v875 = vpack.c.b16 %v679, %v675
        %v876 = vpack.c.b16 %v680, %v676
        %v877 = vpack.c.b16 %v681, %v677
        %v878 = vpack.c.b16 %v686, %v682
        %v879 = vpack.c.b16 %v687, %v683
        %v880 = vpack.c.b16 %v688, %v684
        %v881 = vpack.c.b16 %v689, %v685
        %v882 = vpack.c.b16 %v694, %v690
        %v883 = vpack.c.b16 %v695, %v691
        %v884 = vpack.c.b16 %v696, %v692
        %v885 = vpack.c.b16 %v697, %v693
        %v886 = vpack.c.b16 %v702, %v698
        %v887 = vpack.c.b16 %v703, %v699
        %v888 = vpack.c.b16 %v704, %v700
        %v889 = vpack.c.b16 %v705, %v701
        %v890 = vpack.c.b16 %v710, %v706
        %v891 = vpack.c.b16 %v711, %v707
        %v892 = vpack.c.b16 %v712, %v708
        %v893 = vpack.c.b16 %v713, %v709
        %v894 = vpack.c.b16 %v718, %v714
        %v895 = vpack.c.b16 %v719, %v715
        %v896 = vpack.c.b16 %v720, %v716
        %v897 = vpack.c.b16 %v721, %v717
        %v898 = vpack.c.b16 %v726, %v722
        %v899 = vpack.c.b16 %v727, %v723
        %v900 = vpack.c.b16 %v728, %v724
        %v901 = vpack.c.b16 %v729, %v725
        %v902 = vpack.c.b16 %v734, %v730
        %v903 = vpack.c.b16 %v735, %v731
        %v904 = vpack.c.b16 %v736, %v732
        %v905 = vpack.c.b16 %v737, %v733
        %v906 = vpack.c.b16 %v742, %v738
        %v907 = vpack.c.b16 %v743, %v739
        %v908 = vpack.c.b16 %v744, %v740
        %v909 = vpack.c.b16 %v745, %v741
        %v910 = vpack.c.b16 %v750, %v746
        %v911 = vpack.c.b16 %v751, %v747
        %v912 = vpack.c.b16 %v752, %v748
        %v913 = vpack.c.b16 %v753, %v749
        %v914 = vpack.c.b16 %v758, %v754
        %v915 = vpack.c.b16 %v759, %v755
        %v916 = vpack.c.b16 %v760, %v756
        %v917 = vpack.c.b16 %v761, %v757
        %v918 = vpack.c.b16 %v766, %v762
        %v919 = vpack.c.b16 %v767, %v763
        %v920 = vpack.c.b16 %v768, %v764
        %v921 = vpack.c.b16 %v769, %v765
        %v922 = vpack.c.b16 %v774, %v770
        %v923 = vpack.c.b16 %v775, %v771
        %v924 = vpack.c.b16 %v776, %v772
        %v925 = vpack.c.b16 %v777, %v773
        %v926 = vpack.c.b16 %v782, %v778
        %v927 = vpack.c.b16 %v783, %v779
        %v928 = vpack.c.b16 %v784, %v780
        %v929 = vpack.c.b16 %v785, %v781
        %v930 = vpack.c.b16 %v790, %v786
        %v931 = vpack.c.b16 %v791, %v787
        %v932 = vpack.c.b16 %v792, %v788
        %v933 = vpack.c.b16 %v793, %v789
        %v934 = vpack.c.b16 %v798, %v794
        %v935 = vpack.c.b16 %v799, %v795
        %v936 = vpack.c.b16 %v800, %v796
        %v937 = vpack.c.b16 %v801, %v797
        %v938 = vpack.c.b16 %v806, %v802
        %v939 = vpack.c.b16 %v807, %v803
        %v940 = vpack.c.b16 %v808, %v804
        %v941 = vpack.c.b16 %v809, %v805
        %v942 = vpack.c.b16 %v814, %v810
        %v943 = vpack.c.b16 %v815, %v811
        %v944 = vpack.c.b16 %v816, %v812
        %v945 = vpack.c.b16 %v817, %v813
        %1074 = vmatprep.subr.bf16.mxu0 %v819
        %1075 = vmatpush1.bf16.msra.mxu0 %v818
        %1076 = vmatprep.subr.bf16.mxu0 %v823
        %1077 = vmatpush1.bf16.msra.mxu0 %v822
        %1078 = vmatprep.subr.bf16.mxu0 %v827
        %1079 = vmatpush1.bf16.msra.mxu0 %v826
        %1080 = vmatprep.subr.bf16.mxu0 %v831
        %1081 = vmatpush1.bf16.msra.mxu0 %v830
        %1082 = vmatprep.subr.bf16.mxu0 %v835
        %1083 = vmatpush1.bf16.msra.mxu0 %v834
        %1084 = vmatprep.subr.bf16.mxu0 %v839
        %1085 = vmatpush1.bf16.msra.mxu0 %v838
        %1086 = vmatprep.subr.bf16.mxu0 %v843
        %1087 = vmatpush1.bf16.msra.mxu0 %v842
        %1088 = vmatprep.subr.bf16.mxu0 %v847
        %1089 = vmatpush1.bf16.msra.mxu0 %v846
        %1090 = vmatprep.subr.bf16.mxu0 %v851
        %1091 = vmatpush1.bf16.msra.mxu0 %v850
        %1092 = vmatprep.subr.bf16.mxu0 %v855
        %1093 = vmatpush1.bf16.msra.mxu0 %v854
        %1094 = vmatprep.subr.bf16.mxu0 %v859
        %1095 = vmatpush1.bf16.msra.mxu0 %v858
        %1096 = vmatprep.subr.bf16.mxu0 %v863
        %1097 = vmatpush1.bf16.msra.mxu0 %v862
        %1098 = vmatprep.subr.bf16.mxu0 %v867
        %1099 = vmatpush1.bf16.msra.mxu0 %v866
        %1100 = vmatprep.subr.bf16.mxu0 %v871
        %1101 = vmatpush1.bf16.msra.mxu0 %v870
        %1102 = vmatprep.subr.bf16.mxu0 %v875
        %1103 = vmatpush1.bf16.msra.mxu0 %v874
        %1104 = vmatprep.subr.bf16.mxu0 %v879
        %1105 = vmatpush1.bf16.msra.mxu0 %v878
        %1106 = vmatprep.mubr.bf16.mxu0 %v427
        %1107 = vmatmul.mubr.bf16.gmra.mrb[0].mxu0 %v426
        %v1108 = vpop.f32.mrb[0].mxu0
        %v1109 = vadd.f32 %v403, %v1108
        %v1110 = vpop.f32.mrb[0].mxu0
        %v1111 = vadd.f32 %v407, %v1110
        %v1112 = vpop.f32.mrb[0].mxu0
        %v1113 = vpop.f32.mrb[0].mxu0
        %1114 = vdwg.mxu0
        %1115 = vmatprep.subr.bf16.mxu0 %v883
        %1116 = vmatpush1.bf16.msra.mxu0 %v882
        %1117 = vmatprep.subr.bf16.mxu0 %v887
        %1118 = vmatpush1.bf16.msra.mxu0 %v886
        %1119 = vmatprep.subr.bf16.mxu0 %v891
        %1120 = vmatpush1.bf16.msra.mxu0 %v890
        %1121 = vmatprep.subr.bf16.mxu0 %v895
        %1122 = vmatpush1.bf16.msra.mxu0 %v894
        %1123 = vmatprep.subr.bf16.mxu0 %v899
        %1124 = vmatpush1.bf16.msra.mxu0 %v898
        %1125 = vmatprep.subr.bf16.mxu0 %v903
        %1126 = vmatpush1.bf16.msra.mxu0 %v902
        %1127 = vmatprep.subr.bf16.mxu0 %v907
        %1128 = vmatpush1.bf16.msra.mxu0 %v906
        %1129 = vmatprep.subr.bf16.mxu0 %v911
        %1130 = vmatpush1.bf16.msra.mxu0 %v910
        %1131 = vmatprep.subr.bf16.mxu0 %v915
        %1132 = vmatpush1.bf16.msra.mxu0 %v914
        %1133 = vmatprep.subr.bf16.mxu0 %v919
        %1134 = vmatpush1.bf16.msra.mxu0 %v918
        %1135 = vmatprep.subr.bf16.mxu0 %v923
        %1136 = vmatpush1.bf16.msra.mxu0 %v922
        %1137 = vmatprep.subr.bf16.mxu0 %v927
        %1138 = vmatpush1.bf16.msra.mxu0 %v926
        %1139 = vmatprep.subr.bf16.mxu0 %v931
        %1140 = vmatpush1.bf16.msra.mxu0 %v930
        %1141 = vmatprep.subr.bf16.mxu0 %v935
        %1142 = vmatpush1.bf16.msra.mxu0 %v934
        %1143 = vmatprep.subr.bf16.mxu0 %v939
        %1144 = vmatpush1.bf16.msra.mxu0 %v938
        %1145 = vmatprep.subr.bf16.mxu0 %v943
        %1146 = vmatpush1.bf16.msra.mxu0 %v942
        %1147 = vmatprep.mubr.bf16.mxu0 %v429
        %1148 = vmatmul.mubr.bf16.gmra.mrb[0].mxu0 %v428
        %v1149 = vpop.f32.mrb[0].mxu0
        %v1150 = vadd.f32 %v1109, %v1149
        %v1151 = vpop.f32.mrb[0].mxu0
        %v1152 = vadd.f32 %v1111, %v1151
        %v1153 = vpop.f32.mrb[0].mxu0
        %v1154 = vpop.f32.mrb[0].mxu0
        %1155 = vdwg.mxu0
        %1156 = vmatprep.subr.bf16.mxu0 %v821
        %1157 = vmatpush1.bf16.msra.mxu0 %v820
        %1158 = vmatprep.subr.bf16.mxu0 %v825
        %1159 = vmatpush1.bf16.msra.mxu0 %v824
        %1160 = vmatprep.subr.bf16.mxu0 %v829
        %1161 = vmatpush1.bf16.msra.mxu0 %v828
        %1162 = vmatprep.subr.bf16.mxu0 %v833
        %1163 = vmatpush1.bf16.msra.mxu0 %v832
        %1164 = vmatprep.subr.bf16.mxu0 %v837
        %1165 = vmatpush1.bf16.msra.mxu0 %v836
        %1166 = vmatprep.subr.bf16.mxu0 %v841
        %1167 = vmatpush1.bf16.msra.mxu0 %v840
        %1168 = vmatprep.subr.bf16.mxu0 %v845
        %1169 = vmatpush1.bf16.msra.mxu0 %v844
        %1170 = vmatprep.subr.bf16.mxu0 %v849
        %1171 = vmatpush1.bf16.msra.mxu0 %v848
        %1172 = vmatprep.subr.bf16.mxu0 %v853
        %1173 = vmatpush1.bf16.msra.mxu0 %v852
        %1174 = vmatprep.subr.bf16.mxu0 %v857
        %1175 = vmatpush1.bf16.msra.mxu0 %v856
        %1176 = vmatprep.subr.bf16.mxu0 %v861
        %1177 = vmatpush1.bf16.msra.mxu0 %v860
        %1178 = vmatprep.subr.bf16.mxu0 %v865
        %1179 = vmatpush1.bf16.msra.mxu0 %v864
        %1180 = vmatprep.subr.bf16.mxu0 %v869
        %1181 = vmatpush1.bf16.msra.mxu0 %v868
        %1182 = vmatprep.subr.bf16.mxu0 %v873
        %1183 = vmatpush1.bf16.msra.mxu0 %v872
        %1184 = vmatprep.subr.bf16.mxu0 %v877
        %1185 = vmatpush1.bf16.msra.mxu0 %v876
        %1186 = vmatprep.subr.bf16.mxu0 %v881
        %1187 = vmatpush1.bf16.msra.mxu0 %v880
        %1188 = vmatprep.mubr.bf16.mxu0 %v427
        %1189 = vmatmul.mubr.bf16.gmra.mrb[0].mxu0 %v426
        %v1190 = vpop.f32.mrb[0].mxu0
        %v1191 = vadd.f32 %v411, %v1190
        %v1192 = vpop.f32.mrb[0].mxu0
        %v1193 = vadd.f32 %v415, %v1192
        %v1194 = vpop.f32.mrb[0].mxu0
        %v1195 = vpop.f32.mrb[0].mxu0
        %1196 = vdwg.mxu0
        %1197 = vmatprep.subr.bf16.mxu0 %v885
        %1198 = vmatpush1.bf16.msra.mxu0 %v884
        %1199 = vmatprep.subr.bf16.mxu0 %v889
        %1200 = vmatpush1.bf16.msra.mxu0 %v888
        %1201 = vmatprep.subr.bf16.mxu0 %v893
        %1202 = vmatpush1.bf16.msra.mxu0 %v892
        %1203 = vmatprep.subr.bf16.mxu0 %v897
        %1204 = vmatpush1.bf16.msra.mxu0 %v896
        %1205 = vmatprep.subr.bf16.mxu0 %v901
        %1206 = vmatpush1.bf16.msra.mxu0 %v900
        %1207 = vmatprep.subr.bf16.mxu0 %v905
        %1208 = vmatpush1.bf16.msra.mxu0 %v904
        %1209 = vmatprep.subr.bf16.mxu0 %v909
        %1210 = vmatpush1.bf16.msra.mxu0 %v908
        %1211 = vmatprep.subr.bf16.mxu0 %v913
        %1212 = vmatpush1.bf16.msra.mxu0 %v912
        %1213 = vmatprep.subr.bf16.mxu0 %v917
        %1214 = vmatpush1.bf16.msra.mxu0 %v916
        %1215 = vmatprep.subr.bf16.mxu0 %v921
        %1216 = vmatpush1.bf16.msra.mxu0 %v920
        %1217 = vmatprep.subr.bf16.mxu0 %v925
        %1218 = vmatpush1.bf16.msra.mxu0 %v924
        %1219 = vmatprep.subr.bf16.mxu0 %v929
        %1220 = vmatpush1.bf16.msra.mxu0 %v928
        %1221 = vmatprep.subr.bf16.mxu0 %v933
        %1222 = vmatpush1.bf16.msra.mxu0 %v932
        %1223 = vmatprep.subr.bf16.mxu0 %v937
        %1224 = vmatpush1.bf16.msra.mxu0 %v936
        %1225 = vmatprep.subr.bf16.mxu0 %v941
        %1226 = vmatpush1.bf16.msra.mxu0 %v940
        %1227 = vmatprep.subr.bf16.mxu0 %v945
        %1228 = vmatpush1.bf16.msra.mxu0 %v944
        %1229 = vmatprep.mubr.bf16.mxu0 %v429
        %1230 = vmatmul.mubr.bf16.gmra.mrb[0].mxu0 %v428
        %v1231 = vpop.f32.mrb[0].mxu0
        %v1232 = vadd.f32 %v1191, %v1231
        %v1233 = vpop.f32.mrb[0].mxu0
        %v1234 = vadd.f32 %v1193, %v1233
        %v1235 = vpop.f32.mrb[0].mxu0
        %v1236 = vpop.f32.mrb[0].mxu0
        %1237 = vdwg.mxu0
        %v1238 = vmul.f32 %v1150, 0.2
        %v1239 = vmul.f32 %v1152, 0.2
        %v1240 = vmul.f32 %v1232, 0.2
        %v1241 = vmul.f32 %v1234, 0.2
        %v1242 = vmax.f32 %v1150, %v1238
        %v1243 = vmax.f32 %v1152, %v1239
        %v1244 = vmax.f32 %v1232, %v1240
        %v1245 = vmax.f32 %v1234, %v1241
        %p1246 = scmp.lt.s32.totalorder %s19, 3
        // Predicated region
        $region49: #{tpu_custom_call.1} parent=31 // pred_check
          %p1247 = pneg %p1246
        $region50: #{tpu_custom_call.1} parent=31 // pred_check_branch
          %1249 = sbr.rel (%p1247) target = $region52
        $region51: #{tpu_custom_call.1} parent=31 // pred_region
          %v1250 = vpack.c.bf16 %v1242, %v1242
          %v1251 = vpack.c.bf16 %v1243, %v1243
          %v1252 = vpack.c.bf16 %v1244, %v1244
          %v1253 = vpack.c.bf16 %v1245, %v1245
          %v1258 = vunpack.c.l.b16 %v1250
          %v1259 = vunpack.c.l.b16 %v1251
          %v1260 = vunpack.c.l.b16 %v1252
          %v1261 = vunpack.c.l.b16 %v1253
          %v1262 = vpack.c.b16 %v1259, %v1258
          %v1263 = vpack.c.b16 %v1261, %v1260
          %1266 = vst [vmem:[#allocation2] sm:$0xff] %v1262
          %1267 = vst [vmem:[#allocation2 + $0x8] sm:$0xff] %v1263
        $region52: #{tpu_custom_call.1} parent=31 // pred_fallthru
          _
        %p1268 = scmp.eq.s32.totalorder %s19, 3
        // Predicated region
        $region53: #{tpu_custom_call.1} parent=31 // pred_check
          %p1269 = pneg %p1268
        $region54: #{tpu_custom_call.1} parent=31 // pred_check_branch
          %1271 = sbr.rel (%p1269) target = $region56
        $region55: #{tpu_custom_call.1} parent=31 // pred_region
          %1272 = vst [vmem:[#allocation9] sm:$0xff] %v1242
          %1273 = vst [vmem:[#allocation9 + $0x8] sm:$0xff] %v1243
          %1274 = vst [vmem:[#allocation9 + $0x10] sm:$0xff] %v1244
          %1275 = vst [vmem:[#allocation9 + $0x18] sm:$0xff] %v1245
        $region56: #{tpu_custom_call.1} parent=31 // pred_fallthru
          _
        // Predicated region
        $region57: #{tpu_custom_call.1} parent=31 // pred_check
          %p1276 = pneg %p105
        $region58: #{tpu_custom_call.1} parent=31 // pred_check_branch
          %1278 = sbr.rel (%p1276) target = $region60
        $region59: #{tpu_custom_call.1} parent=31 // pred_region
          %s1280 = ssub.s32 512, 512
          %1281 = vsyncadd [#allocation5], %s1280
          %s1283 = sshll.u32 [#allocation9], 4
          %s1284 = int_to_ptr.vmem [resolvable:$true] %s1283
          %1286 = dma.vmem_to_hbm [thread:$0]  %s1284, 512, %s3, [#allocation5]
        $region60: #{tpu_custom_call.1} parent=31 // pred_fallthru
          _
        // Predicated region
        $region61: #{tpu_custom_call.1} parent=31 // pred_check
          %p1287 = pneg %p105
        $region62: #{tpu_custom_call.1} parent=31 // pred_check_branch
          %1289 = sbr.rel (%p1287) target = $region64
        $region63: #{tpu_custom_call.1} parent=31 // pred_region
          %1290 = dma.done [#allocation5], 512
        $region64: #{tpu_custom_call.1} parent=31 // pred_fallthru
          _
      $region32: #{tpu_custom_call.1} parent=5 // pred_fallthru
        _
      %p1291 = scmp.le.s32.totalorder 2, %s14
      // Predicated region
      $region65: #{tpu_custom_call.1} parent=5 // pred_check
        %p1292 = pneg %p1291
      $region66: #{tpu_custom_call.1} parent=5 // pred_check_branch
        %1294 = sbr.rel (%p1292) target = $region68
      $region67: #{tpu_custom_call.1} parent=5 // pred_region
        %s1295 = ssub.s32 %s14, 2
      $region68: #{tpu_custom_call.1} parent=5 // pred_fallthru
        _
    $region6: #{tpu_custom_call.1} parent=1 // loop_footer
      %s18 = sadd.s32 1, %s14
    $region7: #{tpu_custom_call.1} parent=1 // loop_footer_branch
      %13 = sbr.rel target = $region3
    $region8: #{tpu_custom_call.1} parent=1 // loop_exit
      _
    %1296 = vsyncpa [#allocation4], 1
    %s1297 = scalar_lea.sflag [#allocation4], 1
    %1298 = vsyncpa %s1297, 1
    %1299 = vsyncpa [#allocation7], 1
    %s1300 = scalar_lea.sflag [#allocation7], 1
    %1301 = vsyncpa %s1300, 1
    %1302 = vsyncpa [#allocation5], 1
    %s1303 = scalar_lea.sflag [#allocation5], 1
    %1304 = vsyncpa %s1303, 1

</llo_original>
